<compile_context>
chip_gen: v5e
topology: v5e:2x2
jax: 0.10.0
libtpu: 0.0.40
codegen_flags: <defaults>
</compile_context>

<pallas_src>
import functools

import jax
import jax.numpy as jnp
from jax.experimental import pallas as pl
from jax.experimental.pallas import tpu as pltpu


def _feature_extractor_kernel(x_ref, m_ref, w_ref, b_ref, o_ref, *, L, compute_dtype):
    # x_ref: (1, C, TB*L)  batch tile: channels on sublanes, (batch, length) on lanes
    # m_ref: (2, TB*L)     boundary masks: row0 = (l != 0), row1 = (l != L-1), f32 {0,1}
    # w_ref: (F, 3*C)      conv weight slab, taps folded into the contraction axis
    # b_ref: (F, 1)        conv bias
    # o_ref: (1, F, TB)    pooled features for this batch tile (lane-dense store)
    C = x_ref.shape[1]
    TBL = x_ref.shape[2]
    F = w_ref.shape[0]
    TB = TBL // L

    x = x_ref[0]                                    # (C, TBL)
    not_first = m_ref[0:1, :]                       # (1, TBL)
    not_last = m_ref[1:2, :]                        # (1, TBL)

    # Conv zero-padding (padding=1) realized with XLU lane rotations + the
    # per-segment boundary masks (computed once per call, reused every step).
    x_prev = pltpu.roll(x, shift=1, axis=1) * not_first        # x[l-1]
    x_next = pltpu.roll(x, shift=TBL - 1, axis=1) * not_last   # x[l+1]

    # Fold the 3 taps into the contraction axis -> ONE wide MXU matmul per step.
    x_stk = jnp.concatenate([x_prev, x, x_next], axis=0)       # (3C, TBL)
    w = w_ref[...]
    if compute_dtype is not None:                   # in-kernel cast (hidden under DMA)
        x_stk = x_stk.astype(compute_dtype)
        w = w.astype(compute_dtype)
    y = jnp.dot(w, x_stk, preferred_element_type=jnp.float32)  # (F, TBL)

    # AdaptiveMaxPool1d(1): segmented max over each length-L lane segment.
    m = jnp.max(y.reshape(F, TB, L), axis=-1)                  # (F, TB)

    # Bias + ReLU after the max (both monotone and uniform over L -> identical
    # to the PyTorch order).  Single dense (F, TB) store.
    o_ref[0] = jnp.maximum(m + b_ref[...], 0.0).astype(o_ref.dtype)


def deep_feature_extractor(x, weight, bias, *, compute_dtype=None,
                           vmem_budget_bytes=10 * 2 ** 20):
    """
    x:      (B, C_in, L) float32
    weight: (F, C_in, 3) float32   (PyTorch Conv1d weight layout)
    bias:   (F,)         float32
    compute_dtype: optional matmul-input dtype (e.g. jnp.bfloat16 on v6e/v7x;
                   skip on v5e).  Cast happens inside the kernel; accumulation
                   stays float32.
    returns (B, F) float32
    """
    B, C_in, L = x.shape
    F = weight.shape[0]

    # ---- batch-tile sizing (VMEM-budgeted) ---------------------------------
    # Rough per-batch-row f32 working set: double-buffered input slab, the two
    # shifted copies + stacked (3C, L) operand, the (F, L) matmul result plus
    # its segmented-max relayout copy, and the boundary masks.
    bytes_per_row = 4 * L * (7 * C_in + 2 * F + 4)
    tb_cap = max(1, min(512, vmem_budget_bytes // bytes_per_row))
    if B < 128 and B <= tb_cap:
        tb = B                                   # whole small batch, single step
    else:
        # >=2 grid steps so ("parallel",) can shard across v7x's two TCs; the
        # VMEM cap keeps the per-step footprint well inside v7x's 64 MiB.
        tb = min(tb_cap, max(1, -(-B // 2)))
    n_steps = -(-B // tb)
    bp = tb * n_steps

    # ---- operand layout: channels -> sublanes, (batch, length) -> lanes -----
    xp = x if bp == B else jnp.pad(x, ((0, bp - B), (0, 0), (0, 0)))
    x_w = (xp.reshape(n_steps, tb, C_in, L)
             .transpose(0, 2, 1, 3)
             .reshape(n_steps, C_in, tb * L))

    # Boundary masks (same for every grid step; constant index_map -> DMA'd once).
    lane = jnp.arange(tb * L, dtype=jnp.int32) % L
    masks = jnp.stack([(lane != 0), (lane != L - 1)]).astype(jnp.float32)  # (2, TB*L)

    # Conv weight slab with taps folded into the contraction axis:
    #   w_slab[f, k*C + c] = weight[f, c, k]
    w_slab = jnp.transpose(weight, (0, 2, 1)).reshape(F, 3 * C_in).astype(jnp.float32)
    b2 = bias.reshape(F, 1).astype(jnp.float32)

    kernel = functools.partial(_feature_extractor_kernel, L=L,
                               compute_dtype=compute_dtype)

    flops = 2 * bp * F * L * 3 * C_in
    bytes_accessed = 4 * (x_w.size + masks.size + w_slab.size + b2.size
                          + n_steps * F * tb)

    out = pl.pallas_call(
        kernel,
        out_shape=jax.ShapeDtypeStruct((n_steps, F, tb), jnp.float32),
        grid_spec=pltpu.PrefetchScalarGridSpec(
            num_scalar_prefetch=0,
            grid=(n_steps,),
            in_specs=[
                pl.BlockSpec((1, C_in, tb * L), lambda i: (i, 0, 0)),
                pl.BlockSpec((2, tb * L), lambda i: (0, 0)),
                pl.BlockSpec((F, 3 * C_in), lambda i: (0, 0)),
                pl.BlockSpec((F, 1), lambda i: (0, 0)),
            ],
            out_specs=pl.BlockSpec((1, F, tb), lambda i: (i, 0, 0)),
        ),
        compiler_params=pltpu.CompilerParams(
            dimension_semantics=("parallel",),
            vmem_limit_bytes=32 * 1024 * 1024,
        ),
        cost_estimate=pl.CostEstimate(
            flops=flops, transcendentals=0, bytes_accessed=bytes_accessed),
    )(x_w, masks, w_slab, b2)

    # (steps, F, TB) -> (B, F)
    out = out.transpose(0, 2, 1).reshape(bp, F)
    return out[:B] if bp != B else out


def _reference(x, weight, bias):
    # Pure-JAX reference of the PyTorch forward pass (original op order).
    B, C_in, L = x.shape
    x_pad = jnp.pad(x, ((0, 0), (0, 0), (1, 1)))
    taps = jnp.stack([x_pad[:, :, k:k + L] for k in range(3)], axis=2)  # (B,C,3,L)
    y = jnp.einsum("fck,bckl->bfl", weight, taps,
                   precision=jax.lax.Precision.HIGHEST) + bias[None, :, None]
    return jnp.max(jnp.maximum(y, 0.0), axis=-1)


if __name__ == "__main__":
    key = jax.random.PRNGKey(0)
    kx, kw, kb, kx2 = jax.random.split(key, 4)

    # Small shapes consistent with the module: batch=2, channels=4, length=16, F=32.
    B, C_in, L, F = 2, 4, 16, 32
    x = jax.random.normal(kx, (B, C_in, L), dtype=jnp.float32)
    weight = jax.random.normal(kw, (F, C_in, 3), dtype=jnp.float32) * 0.1
    bias = jax.random.normal(kb, (F,), dtype=jnp.float32) * 0.1

    out = jax.block_until_ready(deep_feature_extractor(x, weight, bias))
    ref = _reference(x, weight, bias)
    assert out.shape == (B, F)
    assert jnp.allclose(out, ref, atol=1e-4, rtol=1e-4)

    # Larger ragged batch: exercises multi-step grid ("parallel" -> megacore),
    # batch padding and the lane-folded (C, TB*L) layout at L=128.
    B2, L2 = 261, 128
    x2 = jax.random.normal(kx2, (B2, C_in, L2), dtype=jnp.float32)
    out2 = jax.block_until_ready(deep_feature_extractor(x2, weight, bias))
    ref2 = _reference(x2, weight, bias)
    assert out2.shape == (B2, F)
    assert jnp.allclose(out2, ref2, atol=1e-4, rtol=1e-4)

    # Optional reduced-precision matmul path (in-kernel cast; looser tolerance).
    out3 = jax.block_until_ready(
        deep_feature_extractor(x2, weight, bias, compute_dtype=jnp.bfloat16))
    assert out3.shape == (B2, F)
    assert jnp.allclose(out3, ref2, atol=5e-2, rtol=5e-2)

    print("KERNEL_OK")
</pallas_src>

<mosaic_0001>
module attributes {stable_mosaic.version = 11 : i64} {
  func.func @_feature_extractor_kernel(%arg0: i32, %arg1: memref<1x4x32xf32, #tpu.memory_space<vmem>>, %arg2: memref<2x32xf32, #tpu.memory_space<vmem>>, %arg3: memref<32x12xf32, #tpu.memory_space<vmem>>, %arg4: memref<32x1xf32, #tpu.memory_space<vmem>>, %arg5: memref<1x32x2xf32, #tpu.memory_space<vmem>>) attributes {dimension_semantics = [#tpu.dimension_semantics<parallel>], iteration_bounds = array<i64: 1>, scalar_prefetch = 0 : i64, scratch_operands = 0 : i64, tpu.core_type = #tpu.core_type<tc>, window_params = [{transform_indices = @transform_0, window_bounds = array<i64: 1, 4, 32>}, {pipeline_mode = #tpu.pipeline_mode<synchronous>, transform_indices = @transform_1, window_bounds = array<i64: 2, 32>}, {pipeline_mode = #tpu.pipeline_mode<synchronous>, transform_indices = @transform_2, window_bounds = array<i64: 32, 12>}, {pipeline_mode = #tpu.pipeline_mode<synchronous>, transform_indices = @transform_3, window_bounds = array<i64: 32, 1>}, {transform_indices = @transform_4, window_bounds = array<i64: 1, 32, 2>}]} {
    %c0 = arith.constant 0 : index
    %c0_0 = arith.constant 0 : index
    %c0_1 = arith.constant 0 : index
    %0 = vector.load %arg1[%c0, %c0_0, %c0_1] : memref<1x4x32xf32, #tpu.memory_space<vmem>>, vector<1x4x32xf32>
    %1 = vector.shape_cast %0 : vector<1x4x32xf32> to vector<4x32xf32>
    %c0_2 = arith.constant 0 : index
    %c0_3 = arith.constant 0 : index
    %2 = vector.load %arg2[%c0_2, %c0_3] : memref<2x32xf32, #tpu.memory_space<vmem>>, vector<1x32xf32>
    %c1 = arith.constant 1 : index
    %c0_4 = arith.constant 0 : index
    %3 = vector.load %arg2[%c1, %c0_4] : memref<2x32xf32, #tpu.memory_space<vmem>>, vector<1x32xf32>
    %c1_i32 = arith.constant 1 : i32
    %4 = tpu.dynamic_rotate %1 by %c1_i32 dim 1 : vector<4x32xf32>, i32 -> vector<4x32xf32>
    %5 = vector.broadcast %2 : vector<1x32xf32> to vector<4x32xf32>
    %6 = arith.mulf %4, %5 : vector<4x32xf32>
    %c31_i32 = arith.constant 31 : i32
    %7 = tpu.dynamic_rotate %1 by %c31_i32 dim 1 : vector<4x32xf32>, i32 -> vector<4x32xf32>
    %8 = vector.broadcast %3 : vector<1x32xf32> to vector<4x32xf32>
    %9 = arith.mulf %7, %8 : vector<4x32xf32>
    %10 = tpu.concatenate %6, %1, %9 in 0 : vector<4x32xf32>, vector<4x32xf32>, vector<4x32xf32> -> vector<12x32xf32>
    %c0_5 = arith.constant 0 : index
    %c0_6 = arith.constant 0 : index
    %11 = vector.load %arg3[%c0_5, %c0_6] : memref<32x12xf32, #tpu.memory_space<vmem>>, vector<32x12xf32>
    %cst = arith.constant dense<0.000000e+00> : vector<32x32xf32>
    %12 = tpu.matmul %11, %10, %cst {dimension_numbers = #tpu.dot_dimension_numbers<[1], [0], [0], [1], [0, 0, 1, 1], [], []>} : vector<32x12xf32>, vector<12x32xf32>, vector<32x32xf32> -> vector<32x32xf32>
    %13 = vector.shape_cast %12 : vector<32x32xf32> to vector<32x2x16xf32>
    %cst_7 = arith.constant dense<0xFF800000> : vector<32x2xf32>
    %14 = vector.multi_reduction <maximumf>, %13, %cst_7 [2] : vector<32x2x16xf32> to vector<32x2xf32>
    %c0_8 = arith.constant 0 : index
    %c0_9 = arith.constant 0 : index
    %15 = vector.load %arg4[%c0_8, %c0_9] : memref<32x1xf32, #tpu.memory_space<vmem>>, vector<32x1xf32>
    %16 = vector.broadcast %15 : vector<32x1xf32> to vector<32x2xf32>
    %17 = arith.addf %14, %16 : vector<32x2xf32>
    %cst_10 = arith.constant 0.000000e+00 : f32
    %18 = vector.broadcast %cst_10 : f32 to vector<32x2xf32>
    %19 = arith.maximumf %17, %18 : vector<32x2xf32>
    %c0_11 = arith.constant 0 : index
    %c0_12 = arith.constant 0 : index
    %c0_13 = arith.constant 0 : index
    %20 = vector.load %arg5[%c0_11, %c0_12, %c0_13] : memref<1x32x2xf32, #tpu.memory_space<vmem>>, vector<1x32x2xf32>
    %21 = vector.shape_cast %20 : vector<1x32x2xf32> to vector<32x2xf32>
    %22 = vector.shape_cast %19 : vector<32x2xf32> to vector<1x32x2xf32>
    tpu.vector_store %arg5[%c0_11, %c0_12, %c0_13], %22 {strides = array<i32>} : memref<1x32x2xf32, #tpu.memory_space<vmem>>, vector<1x32x2xf32>,
    return
  }
  func.func @transform_0(%arg0: i32) -> (i32, i32, i32) {
    %c0_i32 = arith.constant 0 : i32
    %c0_i32_0 = arith.constant 0 : i32
    %c0_i32_1 = arith.constant 0 : i32
    return %arg0, %c0_i32, %c0_i32_0 : i32, i32, i32
  }
  func.func @transform_1(%arg0: i32) -> (i32, i32) {
    %c0_i32 = arith.constant 0 : i32
    %c0_i32_0 = arith.constant 0 : i32
    %c0_i32_1 = arith.constant 0 : i32
    return %c0_i32, %c0_i32_0 : i32, i32
  }
  func.func @transform_2(%arg0: i32) -> (i32, i32) {
    %c0_i32 = arith.constant 0 : i32
    %c0_i32_0 = arith.constant 0 : i32
    %c0_i32_1 = arith.constant 0 : i32
    return %c0_i32, %c0_i32_0 : i32, i32
  }
  func.func @transform_3(%arg0: i32) -> (i32, i32) {
    %c0_i32 = arith.constant 0 : i32
    %c0_i32_0 = arith.constant 0 : i32
    %c0_i32_1 = arith.constant 0 : i32
    return %c0_i32, %c0_i32_0 : i32, i32
  }
  func.func @transform_4(%arg0: i32) -> (i32, i32, i32) {
    %c0_i32 = arith.constant 0 : i32
    %c0_i32_0 = arith.constant 0 : i32
    %c0_i32_1 = arith.constant 0 : i32
    return %arg0, %c0_i32, %c0_i32_0 : i32, i32, i32
  }
}

</mosaic_0001>

<llo_original>
// kernel: tpu_custom_call.1
$region0: #{tpu_custom_call.1}
  #allocation0 [shape = 'u32[]', space=smem, size = 0x4, offset = 0x4, fixed_abs, tag = 'smem constant byte address 0x4 - core index']
  #allocation1 [shape = 'u32[72,128]{1,0:T(1,128)}', space=vmem, size = 0x9000, scoped, tag = 'internal scratch']
  %s0 = inlined_call_operand.vmem [shape: f32[1,4,32], index: 0, kind: input, shape index: {}]
  %s1 = inlined_call_operand.vmem [shape: f32[2,32], index: 1, kind: input, shape index: {}]
  %s2 = inlined_call_operand.vmem [shape: f32[32,12], index: 2, kind: input, shape index: {}]
  %s3 = inlined_call_operand.vmem [shape: f32[32,1], index: 3, kind: input, shape index: {}]
  %s4 = inlined_call_operand.vmem [shape: f32[1,32,2], index: 4, kind: output, shape index: {}]
  %s5 = sld [smem:[#allocation0]]
  $region26: #{tpu_custom_call.1} parent=0
    _
  %s7 = ssub.s32 1, %s5
  %s8 = scalar_select 0, %s7, %s5
  // Predicated region
  $region2: #{tpu_custom_call.1} parent=0 // pred_check
    _
  $region3: #{tpu_custom_call.1} parent=0 // pred_check_branch
    %10 = sbr.rel (0) target = $region5
  $region4: #{tpu_custom_call.1} parent=0 // pred_region
    _
  $region5: #{tpu_custom_call.1} parent=0 // pred_fallthru
    _
  // Predicated region
  $region6: #{tpu_custom_call.1} parent=0 // pred_check
    _
  $region7: #{tpu_custom_call.1} parent=0 // pred_check_branch
    %12 = sbr.rel (0) target = $region9
  $region8: #{tpu_custom_call.1} parent=0 // pred_region
    _
  $region9: #{tpu_custom_call.1} parent=0 // pred_fallthru
    _
  // Predicated region
  $region10: #{tpu_custom_call.1} parent=0 // pred_check
    _
  $region11: #{tpu_custom_call.1} parent=0 // pred_check_branch
    %14 = sbr.rel (0) target = $region13
  $region12: #{tpu_custom_call.1} parent=0 // pred_region
    _
  $region13: #{tpu_custom_call.1} parent=0 // pred_fallthru
    _
  // Predicated region
  $region14: #{tpu_custom_call.1} parent=0 // pred_check
    _
  $region15: #{tpu_custom_call.1} parent=0 // pred_check_branch
    %16 = sbr.rel (0) target = $region17
  $region16: #{tpu_custom_call.1} parent=0 // pred_region
    _
  $region17: #{tpu_custom_call.1} parent=0 // pred_fallthru
    _
  %v17 = vld [vmem:[%s0] sm:$0xf]
  %v18 = vld [vmem:[%s1] sm:$0x1]
  %v19 = vld [vmem:[%s1 + $0x1] sm:$0x1]
  %vm20 = vcmask 1047808
  %21 = vrot.lane.b32.xlu0 %v17, 32
  %v22 = vpop.permute.xlu0 %21
  %v23 = vsel %vm20, %v22, %v17
  %24 = vrot.lane.b32.xlu0 %v23, 32
  %v25 = vpop.permute.xlu0 %24
  %v26 = vsel %vm20, %v25, %v17
  %v27 = vperm.slane %v18, 0
  %29 = vrot.lane.b32.xlu0 %v27, 31
  %v30 = vpop.permute.xlu0 %29
  %v32 = vmul.f32 %v26, %v30
  %v33 = vperm.slane %v19, 0
  %35 = vrot.lane.b32.xlu0 %v33, 1
  %v36 = vpop.permute.xlu0 %35
  %v38 = vmul.f32 %v26, %v36
  %v40 = vrot.slane %v17, 4
  %41 = vrot.lane.b32.xlu0 %v40, 31
  %v42 = vpop.permute.xlu0 %41
  %45 = vrot.lane.b32.xlu0 %v38, 30
  %v46 = vpop.permute.xlu0 %45
  %vm47 = vcmask 1043456
  %v48 = vsel %vm47, %v32, %v42
  %v49 = vld [vmem:[%s2] sm:$0xff]
  %v50 = vld [vmem:[%s2 + $0x8] sm:$0xff]
  %v51 = vld [vmem:[%s2 + $0x10] sm:$0xff]
  %v52 = vld [vmem:[%s2 + $0x18] sm:$0xff]
  %54 = vrot.lane.b32.xlu0 %v48, 97
  %v55 = vpop.permute.xlu0 %54
  %56 = vrot.lane.b32.xlu0 %v46, 97
  %v57 = vpop.permute.xlu0 %56
  %vm59 = vcmask 97280
  %v61 = vsel %vm59, %v49, 0
  %v64 = vsel %vm59, %v50, 0
  %v67 = vsel %vm59, %v51, 0
  %v70 = vsel %vm59, %v52, 0
  %v72 = vsel %vm47, %v57, 0
  %74 = vmatpush.msra.mxu0 0.0
  %75 = vmatpush.msra.mxu0 0.0
  %76 = vmatpush.msra.mxu0 0.0
  %77 = vmatpush.msra.mxu0 0.0
  %78 = vmatpush.msra.mxu0 0.0
  %79 = vmatpush.msra.mxu0 0.0
  %80 = vmatpush.msra.mxu0 0.0
  %81 = vmatpush.msra.mxu0 0.0
  %82 = vmatpush.msra.mxu0 0.0
  %83 = vmatpush.msra.mxu0 0.0
  %84 = vmatpush.msra.mxu0 0.0
  %85 = vmatpush.msra.mxu0 0.0
  %86 = vmatpush.msra.mxu0 0.0
  %87 = vmatpush.msra.mxu0 0.0
  %88 = vmatpush.msra.mxu0 %v72
  %89 = vmatpush.msra.mxu0 %v55
  %90 = vmatmul.f32.gmra.mxu0 %v61
  %v91 = vpop.f32.mrf.mxu0
  %v92 = vadd.f32 0.0, %v91
  %93 = vmatmul.f32.gmra.mxu0 %v64
  %v94 = vpop.f32.mrf.mxu0
  %v95 = vadd.f32 0.0, %v94
  %96 = vmatmul.f32.gmra.mxu0 %v67
  %v97 = vpop.f32.mrf.mxu0
  %v98 = vadd.f32 0.0, %v97
  %99 = vmatmul.f32.gmra.mxu0 %v70
  %v100 = vpop.f32.mrf.mxu0
  %v101 = vadd.f32 0.0, %v100
  %102 = vdwg.mxu0
  %107 = vrot.lane.b32.xlu0 %v92, 112
  %v108 = vpop.permute.xlu0 %107
  %109 = vrot.lane.b32.xlu0 %v95, 112
  %v110 = vpop.permute.xlu0 %109
  %111 = vrot.lane.b32.xlu0 %v98, 112
  %v112 = vpop.permute.xlu0 %111
  %113 = vrot.lane.b32.xlu0 %v101, 112
  %v114 = vpop.permute.xlu0 %113
  %v119 = vrot.slane %v92, 4
  %vm120 = vcmask 1047556
  %v121 = vsel %vm120, 0.0, %v119
  %v123 = vunpack.c.l.s4 1983009808
  %v124 = vunpack.c.0.s8 %v123
  %v125 = vperm.slane %v92, %v124
  %v127 = vunpack.c.l.s4 1983009808
  %v128 = vunpack.c.0.s8 %v127
  %v129 = vperm.slane %v121, %v128
  %v130 = vrot.slane %v108, 4
  %v131 = vsel %vm120, 0.0, %v130
  %v133 = vunpack.c.l.s4 1983009808
  %v134 = vunpack.c.0.s8 %v133
  %v135 = vperm.slane %v108, %v134
  %v137 = vunpack.c.l.s4 1983009808
  %v138 = vunpack.c.0.s8 %v137
  %v139 = vperm.slane %v131, %v138
  %v140 = vrot.slane %v135, 4
  %v141 = vsel %vm120, %v140, %v125
  %v142 = vrot.slane %v125, 4
  %v143 = vsel %vm120, %v135, %v142
  %v145 = vunpack.c.l.s4 1934713408
  %v146 = vunpack.c.0.s8 %v145
  %v147 = vperm.slane %v141, %v146
  %v149 = vunpack.c.l.s4 1934713408
  %v150 = vunpack.c.0.s8 %v149
  %v151 = vperm.slane %v143, %v150
  %v152 = vrot.slane %v139, 4
  %v153 = vsel %vm120, %v152, %v129
  %v154 = vrot.slane %v129, 4
  %v155 = vsel %vm120, %v139, %v154
  %v157 = vunpack.c.l.s4 1934713408
  %v158 = vunpack.c.0.s8 %v157
  %v159 = vperm.slane %v153, %v158
  %v161 = vunpack.c.l.s4 1934713408
  %v162 = vunpack.c.0.s8 %v161
  %v163 = vperm.slane %v155, %v162
  %v164 = vrot.slane %v147, 4
  %v165 = vsel %vm120, 0.0, %v164
  %v166 = vrot.slane %v151, 4
  %v167 = vsel %vm120, 0.0, %v166
  %v168 = vrot.slane %v159, 4
  %v169 = vsel %vm120, 0.0, %v168
  %v170 = vrot.slane %v163, 4
  %v171 = vsel %vm120, 0.0, %v170
  %v172 = vrot.slane %v95, 4
  %v173 = vsel %vm120, 0.0, %v172
  %v175 = vunpack.c.l.s4 1983009808
  %v176 = vunpack.c.0.s8 %v175
  %v177 = vperm.slane %v95, %v176
  %v179 = vunpack.c.l.s4 1983009808
  %v180 = vunpack.c.0.s8 %v179
  %v181 = vperm.slane %v173, %v180
  %v182 = vrot.slane %v110, 4
  %v183 = vsel %vm120, 0.0, %v182
  %v185 = vunpack.c.l.s4 1983009808
  %v186 = vunpack.c.0.s8 %v185
  %v187 = vperm.slane %v110, %v186
  %v189 = vunpack.c.l.s4 1983009808
  %v190 = vunpack.c.0.s8 %v189
  %v191 = vperm.slane %v183, %v190
  %v192 = vrot.slane %v187, 4
  %v193 = vsel %vm120, %v192, %v177
  %v194 = vrot.slane %v177, 4
  %v195 = vsel %vm120, %v187, %v194
  %v197 = vunpack.c.l.s4 1934713408
  %v198 = vunpack.c.0.s8 %v197
  %v199 = vperm.slane %v193, %v198
  %v201 = vunpack.c.l.s4 1934713408
  %v202 = vunpack.c.0.s8 %v201
  %v203 = vperm.slane %v195, %v202
  %v204 = vrot.slane %v191, 4
  %v205 = vsel %vm120, %v204, %v181
  %v206 = vrot.slane %v181, 4
  %v207 = vsel %vm120, %v191, %v206
  %v209 = vunpack.c.l.s4 1934713408
  %v210 = vunpack.c.0.s8 %v209
  %v211 = vperm.slane %v205, %v210
  %v213 = vunpack.c.l.s4 1934713408
  %v214 = vunpack.c.0.s8 %v213
  %v215 = vperm.slane %v207, %v214
  %v216 = vrot.slane %v199, 4
  %v217 = vsel %vm120, 0.0, %v216
  %v218 = vrot.slane %v203, 4
  %v219 = vsel %vm120, 0.0, %v218
  %v220 = vrot.slane %v211, 4
  %v221 = vsel %vm120, 0.0, %v220
  %v222 = vrot.slane %v215, 4
  %v223 = vsel %vm120, 0.0, %v222
  %v224 = vrot.slane %v98, 4
  %v225 = vsel %vm120, 0.0, %v224
  %v227 = vunpack.c.l.s4 1983009808
  %v228 = vunpack.c.0.s8 %v227
  %v229 = vperm.slane %v98, %v228
  %v231 = vunpack.c.l.s4 1983009808
  %v232 = vunpack.c.0.s8 %v231
  %v233 = vperm.slane %v225, %v232
  %v234 = vrot.slane %v112, 4
  %v235 = vsel %vm120, 0.0, %v234
  %v237 = vunpack.c.l.s4 1983009808
  %v238 = vunpack.c.0.s8 %v237
  %v239 = vperm.slane %v112, %v238
  %v241 = vunpack.c.l.s4 1983009808
  %v242 = vunpack.c.0.s8 %v241
  %v243 = vperm.slane %v235, %v242
  %v244 = vrot.slane %v239, 4
  %v245 = vsel %vm120, %v244, %v229
  %v246 = vrot.slane %v229, 4
  %v247 = vsel %vm120, %v239, %v246
  %v249 = vunpack.c.l.s4 1934713408
  %v250 = vunpack.c.0.s8 %v249
  %v251 = vperm.slane %v245, %v250
  %v253 = vunpack.c.l.s4 1934713408
  %v254 = vunpack.c.0.s8 %v253
  %v255 = vperm.slane %v247, %v254
  %v256 = vrot.slane %v243, 4
  %v257 = vsel %vm120, %v256, %v233
  %v258 = vrot.slane %v233, 4
  %v259 = vsel %vm120, %v243, %v258
  %v261 = vunpack.c.l.s4 1934713408
  %v262 = vunpack.c.0.s8 %v261
  %v263 = vperm.slane %v257, %v262
  %v265 = vunpack.c.l.s4 1934713408
  %v266 = vunpack.c.0.s8 %v265
  %v267 = vperm.slane %v259, %v266
  %v268 = vrot.slane %v251, 4
  %v269 = vsel %vm120, 0.0, %v268
  %v270 = vrot.slane %v255, 4
  %v271 = vsel %vm120, 0.0, %v270
  %v272 = vrot.slane %v263, 4
  %v273 = vsel %vm120, 0.0, %v272
  %v274 = vrot.slane %v267, 4
  %v275 = vsel %vm120, 0.0, %v274
  %v276 = vrot.slane %v101, 4
  %v277 = vsel %vm120, 0.0, %v276
  %v279 = vunpack.c.l.s4 1983009808
  %v280 = vunpack.c.0.s8 %v279
  %v281 = vperm.slane %v101, %v280
  %v283 = vunpack.c.l.s4 1983009808
  %v284 = vunpack.c.0.s8 %v283
  %v285 = vperm.slane %v277, %v284
  %v286 = vrot.slane %v114, 4
  %v287 = vsel %vm120, 0.0, %v286
  %v289 = vunpack.c.l.s4 1983009808
  %v290 = vunpack.c.0.s8 %v289
  %v291 = vperm.slane %v114, %v290
  %v293 = vunpack.c.l.s4 1983009808
  %v294 = vunpack.c.0.s8 %v293
  %v295 = vperm.slane %v287, %v294
  %v296 = vrot.slane %v291, 4
  %v297 = vsel %vm120, %v296, %v281
  %v298 = vrot.slane %v281, 4
  %v299 = vsel %vm120, %v291, %v298
  %v301 = vunpack.c.l.s4 1934713408
  %v302 = vunpack.c.0.s8 %v301
  %v303 = vperm.slane %v297, %v302
  %v305 = vunpack.c.l.s4 1934713408
  %v306 = vunpack.c.0.s8 %v305
  %v307 = vperm.slane %v299, %v306
  %v308 = vrot.slane %v295, 4
  %v309 = vsel %vm120, %v308, %v285
  %v310 = vrot.slane %v285, 4
  %v311 = vsel %vm120, %v295, %v310
  %v313 = vunpack.c.l.s4 1934713408
  %v314 = vunpack.c.0.s8 %v313
  %v315 = vperm.slane %v309, %v314
  %v317 = vunpack.c.l.s4 1934713408
  %v318 = vunpack.c.0.s8 %v317
  %v319 = vperm.slane %v311, %v318
  %v320 = vrot.slane %v303, 4
  %v321 = vsel %vm120, 0.0, %v320
  %v322 = vrot.slane %v307, 4
  %v323 = vsel %vm120, 0.0, %v322
  %v324 = vrot.slane %v315, 4
  %v325 = vsel %vm120, 0.0, %v324
  %v326 = vrot.slane %v319, 4
  %v327 = vsel %vm120, 0.0, %v326
  %vm328 = vcmask 123904
  %v329 = vsel %vm328, %v147, -inf
  %330 = vmax.xlane.f32.xlu0 %v329
  %v331 = vpop.xlane.xlu0 %330
  %v332 = vsel %vm328, %v165, -inf
  %333 = vmax.xlane.f32.xlu0 %v332
  %v334 = vpop.xlane.xlu0 %333
  %v335 = vsel %vm328, %v151, -inf
  %336 = vmax.xlane.f32.xlu0 %v335
  %v337 = vpop.xlane.xlu0 %336
  %v338 = vsel %vm328, %v167, -inf
  %339 = vmax.xlane.f32.xlu0 %v338
  %v340 = vpop.xlane.xlu0 %339
  %v341 = vsel %vm328, %v159, -inf
  %342 = vmax.xlane.f32.xlu0 %v341
  %v343 = vpop.xlane.xlu0 %342
  %v344 = vsel %vm328, %v169, -inf
  %345 = vmax.xlane.f32.xlu0 %v344
  %v346 = vpop.xlane.xlu0 %345
  %v347 = vsel %vm328, %v163, -inf
  %348 = vmax.xlane.f32.xlu0 %v347
  %v349 = vpop.xlane.xlu0 %348
  %v350 = vsel %vm328, %v171, -inf
  %351 = vmax.xlane.f32.xlu0 %v350
  %v352 = vpop.xlane.xlu0 %351
  %v353 = vsel %vm328, %v199, -inf
  %354 = vmax.xlane.f32.xlu0 %v353
  %v355 = vpop.xlane.xlu0 %354
  %v356 = vsel %vm328, %v217, -inf
  %357 = vmax.xlane.f32.xlu0 %v356
  %v358 = vpop.xlane.xlu0 %357
  %v359 = vsel %vm328, %v203, -inf
  %360 = vmax.xlane.f32.xlu0 %v359
  %v361 = vpop.xlane.xlu0 %360
  %v362 = vsel %vm328, %v219, -inf
  %363 = vmax.xlane.f32.xlu0 %v362
  %v364 = vpop.xlane.xlu0 %363
  %v365 = vsel %vm328, %v211, -inf
  %366 = vmax.xlane.f32.xlu0 %v365
  %v367 = vpop.xlane.xlu0 %366
  %v368 = vsel %vm328, %v221, -inf
  %369 = vmax.xlane.f32.xlu0 %v368
  %v370 = vpop.xlane.xlu0 %369
  %v371 = vsel %vm328, %v215, -inf
  %372 = vmax.xlane.f32.xlu0 %v371
  %v373 = vpop.xlane.xlu0 %372
  %v374 = vsel %vm328, %v223, -inf
  %375 = vmax.xlane.f32.xlu0 %v374
  %v376 = vpop.xlane.xlu0 %375
  %v377 = vsel %vm328, %v251, -inf
  %378 = vmax.xlane.f32.xlu0 %v377
  %v379 = vpop.xlane.xlu0 %378
  %v380 = vsel %vm328, %v269, -inf
  %381 = vmax.xlane.f32.xlu0 %v380
  %v382 = vpop.xlane.xlu0 %381
  %v383 = vsel %vm328, %v255, -inf
  %384 = vmax.xlane.f32.xlu0 %v383
  %v385 = vpop.xlane.xlu0 %384
  %v386 = vsel %vm328, %v271, -inf
  %387 = vmax.xlane.f32.xlu0 %v386
  %v388 = vpop.xlane.xlu0 %387
  %v389 = vsel %vm328, %v263, -inf
  %390 = vmax.xlane.f32.xlu0 %v389
  %v391 = vpop.xlane.xlu0 %390
  %v392 = vsel %vm328, %v273, -inf
  %393 = vmax.xlane.f32.xlu0 %v392
  %v394 = vpop.xlane.xlu0 %393
  %v395 = vsel %vm328, %v267, -inf
  %396 = vmax.xlane.f32.xlu0 %v395
  %v397 = vpop.xlane.xlu0 %396
  %v398 = vsel %vm328, %v275, -inf
  %399 = vmax.xlane.f32.xlu0 %v398
  %v400 = vpop.xlane.xlu0 %399
  %v401 = vsel %vm328, %v303, -inf
  %402 = vmax.xlane.f32.xlu0 %v401
  %v403 = vpop.xlane.xlu0 %402
  %v404 = vsel %vm328, %v321, -inf
  %405 = vmax.xlane.f32.xlu0 %v404
  %v406 = vpop.xlane.xlu0 %405
  %v407 = vsel %vm328, %v307, -inf
  %408 = vmax.xlane.f32.xlu0 %v407
  %v409 = vpop.xlane.xlu0 %408
  %v410 = vsel %vm328, %v323, -inf
  %411 = vmax.xlane.f32.xlu0 %v410
  %v412 = vpop.xlane.xlu0 %411
  %v413 = vsel %vm328, %v315, -inf
  %414 = vmax.xlane.f32.xlu0 %v413
  %v415 = vpop.xlane.xlu0 %414
  %v416 = vsel %vm328, %v325, -inf
  %417 = vmax.xlane.f32.xlu0 %v416
  %v418 = vpop.xlane.xlu0 %417
  %v419 = vsel %vm328, %v319, -inf
  %420 = vmax.xlane.f32.xlu0 %v419
  %v421 = vpop.xlane.xlu0 %420
  %v422 = vsel %vm328, %v327, -inf
  %423 = vmax.xlane.f32.xlu0 %v422
  %v424 = vpop.xlane.xlu0 %423
  %v425 = vld [vmem:[%s3] sm:$0xff]
  %v426 = vld [vmem:[%s3 + $0x8] sm:$0xff]
  %v427 = vld [vmem:[%s3 + $0x10] sm:$0xff]
  %v428 = vld [vmem:[%s3 + $0x18] sm:$0xff]
  %430 = vset.pattern.permute.xlu0 0
  %431 = vperm.xlu0 %430, %v425
  %v432 = vpop.permute.xlu0 %431
  %434 = vset.pattern.permute.xlu0 0
  %435 = vperm.xlu0 %434, %v426
  %v436 = vpop.permute.xlu0 %435
  %438 = vset.pattern.permute.xlu0 0
  %439 = vperm.xlu0 %438, %v427
  %v440 = vpop.permute.xlu0 %439
  %442 = vset.pattern.permute.xlu0 0
  %443 = vperm.xlu0 %442, %v428
  %v444 = vpop.permute.xlu0 %443
  %v445 = vperm.slane %v432, 0
  %v446 = vperm.slane %v432, 1
  %v447 = vperm.slane %v432, 2
  %v448 = vperm.slane %v432, 3
  %v449 = vperm.slane %v432, 4
  %v450 = vperm.slane %v432, 5
  %v451 = vperm.slane %v432, 6
  %v452 = vperm.slane %v432, 7
  %v453 = vperm.slane %v436, 0
  %v454 = vperm.slane %v436, 1
  %v455 = vperm.slane %v436, 2
  %v456 = vperm.slane %v436, 3
  %v457 = vperm.slane %v436, 4
  %v458 = vperm.slane %v436, 5
  %v459 = vperm.slane %v436, 6
  %v460 = vperm.slane %v436, 7
  %v461 = vperm.slane %v440, 0
  %v462 = vperm.slane %v440, 1
  %v463 = vperm.slane %v440, 2
  %v464 = vperm.slane %v440, 3
  %v465 = vperm.slane %v440, 4
  %v466 = vperm.slane %v440, 5
  %v467 = vperm.slane %v440, 6
  %v468 = vperm.slane %v440, 7
  %v469 = vperm.slane %v444, 0
  %v470 = vperm.slane %v444, 1
  %v471 = vperm.slane %v444, 2
  %v472 = vperm.slane %v444, 3
  %v473 = vperm.slane %v444, 4
  %v474 = vperm.slane %v444, 5
  %v475 = vperm.slane %v444, 6
  %v476 = vperm.slane %v444, 7
  %v509 = vadd.f32 %v331, %v445
  %v510 = vadd.f32 %v334, %v446
  %v511 = vadd.f32 %v337, %v447
  %v512 = vadd.f32 %v340, %v448
  %v513 = vadd.f32 %v343, %v449
  %v514 = vadd.f32 %v346, %v450
  %v515 = vadd.f32 %v349, %v451
  %v516 = vadd.f32 %v352, %v452
  %v517 = vadd.f32 %v355, %v453
  %v518 = vadd.f32 %v358, %v454
  %v519 = vadd.f32 %v361, %v455
  %v520 = vadd.f32 %v364, %v456
  %v521 = vadd.f32 %v367, %v457
  %v522 = vadd.f32 %v370, %v458
  %v523 = vadd.f32 %v373, %v459
  %v524 = vadd.f32 %v376, %v460
  %v525 = vadd.f32 %v379, %v461
  %v526 = vadd.f32 %v382, %v462
  %v527 = vadd.f32 %v385, %v463
  %v528 = vadd.f32 %v388, %v464
  %v529 = vadd.f32 %v391, %v465
  %v530 = vadd.f32 %v394, %v466
  %v531 = vadd.f32 %v397, %v467
  %v532 = vadd.f32 %v400, %v468
  %v533 = vadd.f32 %v403, %v469
  %v534 = vadd.f32 %v406, %v470
  %v535 = vadd.f32 %v409, %v471
  %v536 = vadd.f32 %v412, %v472
  %v537 = vadd.f32 %v415, %v473
  %v538 = vadd.f32 %v418, %v474
  %v539 = vadd.f32 %v421, %v475
  %v540 = vadd.f32 %v424, %v476
  %v541 = vmax.f32 %v509, 0.0
  %v542 = vmax.f32 %v510, 0.0
  %v543 = vmax.f32 %v511, 0.0
  %v544 = vmax.f32 %v512, 0.0
  %v545 = vmax.f32 %v513, 0.0
  %v546 = vmax.f32 %v514, 0.0
  %v547 = vmax.f32 %v515, 0.0
  %v548 = vmax.f32 %v516, 0.0
  %v549 = vmax.f32 %v517, 0.0
  %v550 = vmax.f32 %v518, 0.0
  %v551 = vmax.f32 %v519, 0.0
  %v552 = vmax.f32 %v520, 0.0
  %v553 = vmax.f32 %v521, 0.0
  %v554 = vmax.f32 %v522, 0.0
  %v555 = vmax.f32 %v523, 0.0
  %v556 = vmax.f32 %v524, 0.0
  %v557 = vmax.f32 %v525, 0.0
  %v558 = vmax.f32 %v526, 0.0
  %v559 = vmax.f32 %v527, 0.0
  %v560 = vmax.f32 %v528, 0.0
  %v561 = vmax.f32 %v529, 0.0
  %v562 = vmax.f32 %v530, 0.0
  %v563 = vmax.f32 %v531, 0.0
  %v564 = vmax.f32 %v532, 0.0
  %v565 = vmax.f32 %v533, 0.0
  %v566 = vmax.f32 %v534, 0.0
  %v567 = vmax.f32 %v535, 0.0
  %v568 = vmax.f32 %v536, 0.0
  %v569 = vmax.f32 %v537, 0.0
  %v570 = vmax.f32 %v538, 0.0
  %v571 = vmax.f32 %v539, 0.0
  %v572 = vmax.f32 %v540, 0.0
  %605 = vset.pattern.permute.xlu0 0
  %606 = vperm.xlu0 %605, %v541
  %v607 = vpop.permute.xlu0 %606
  %608 = vset.pattern.permute.xlu0 0
  %609 = vperm.xlu0 %608, %v542
  %v610 = vpop.permute.xlu0 %609
  %611 = vset.pattern.permute.xlu0 0
  %612 = vperm.xlu0 %611, %v543
  %v613 = vpop.permute.xlu0 %612
  %614 = vset.pattern.permute.xlu0 0
  %615 = vperm.xlu0 %614, %v544
  %v616 = vpop.permute.xlu0 %615
  %617 = vset.pattern.permute.xlu0 0
  %618 = vperm.xlu0 %617, %v545
  %v619 = vpop.permute.xlu0 %618
  %620 = vset.pattern.permute.xlu0 0
  %621 = vperm.xlu0 %620, %v546
  %v622 = vpop.permute.xlu0 %621
  %623 = vset.pattern.permute.xlu0 0
  %624 = vperm.xlu0 %623, %v547
  %v625 = vpop.permute.xlu0 %624
  %626 = vset.pattern.permute.xlu0 0
  %627 = vperm.xlu0 %626, %v548
  %v628 = vpop.permute.xlu0 %627
  %629 = vset.pattern.permute.xlu0 0
  %630 = vperm.xlu0 %629, %v549
  %v631 = vpop.permute.xlu0 %630
  %632 = vset.pattern.permute.xlu0 0
  %633 = vperm.xlu0 %632, %v550
  %v634 = vpop.permute.xlu0 %633
  %635 = vset.pattern.permute.xlu0 0
  %636 = vperm.xlu0 %635, %v551
  %v637 = vpop.permute.xlu0 %636
  %638 = vset.pattern.permute.xlu0 0
  %639 = vperm.xlu0 %638, %v552
  %v640 = vpop.permute.xlu0 %639
  %641 = vset.pattern.permute.xlu0 0
  %642 = vperm.xlu0 %641, %v553
  %v643 = vpop.permute.xlu0 %642
  %644 = vset.pattern.permute.xlu0 0
  %645 = vperm.xlu0 %644, %v554
  %v646 = vpop.permute.xlu0 %645
  %647 = vset.pattern.permute.xlu0 0
  %648 = vperm.xlu0 %647, %v555
  %v649 = vpop.permute.xlu0 %648
  %650 = vset.pattern.permute.xlu0 0
  %651 = vperm.xlu0 %650, %v556
  %v652 = vpop.permute.xlu0 %651
  %653 = vset.pattern.permute.xlu0 0
  %654 = vperm.xlu0 %653, %v557
  %v655 = vpop.permute.xlu0 %654
  %656 = vset.pattern.permute.xlu0 0
  %657 = vperm.xlu0 %656, %v558
  %v658 = vpop.permute.xlu0 %657
  %659 = vset.pattern.permute.xlu0 0
  %660 = vperm.xlu0 %659, %v559
  %v661 = vpop.permute.xlu0 %660
  %662 = vset.pattern.permute.xlu0 0
  %663 = vperm.xlu0 %662, %v560
  %v664 = vpop.permute.xlu0 %663
  %665 = vset.pattern.permute.xlu0 0
  %666 = vperm.xlu0 %665, %v561
  %v667 = vpop.permute.xlu0 %666
  %668 = vset.pattern.permute.xlu0 0
  %669 = vperm.xlu0 %668, %v562
  %v670 = vpop.permute.xlu0 %669
  %671 = vset.pattern.permute.xlu0 0
  %672 = vperm.xlu0 %671, %v563
  %v673 = vpop.permute.xlu0 %672
  %674 = vset.pattern.permute.xlu0 0
  %675 = vperm.xlu0 %674, %v564
  %v676 = vpop.permute.xlu0 %675
  %677 = vset.pattern.permute.xlu0 0
  %678 = vperm.xlu0 %677, %v565
  %v679 = vpop.permute.xlu0 %678
  %680 = vset.pattern.permute.xlu0 0
  %681 = vperm.xlu0 %680, %v566
  %v682 = vpop.permute.xlu0 %681
  %683 = vset.pattern.permute.xlu0 0
  %684 = vperm.xlu0 %683, %v567
  %v685 = vpop.permute.xlu0 %684
  %686 = vset.pattern.permute.xlu0 0
  %687 = vperm.xlu0 %686, %v568
  %v688 = vpop.permute.xlu0 %687
  %689 = vset.pattern.permute.xlu0 0
  %690 = vperm.xlu0 %689, %v569
  %v691 = vpop.permute.xlu0 %690
  %692 = vset.pattern.permute.xlu0 0
  %693 = vperm.xlu0 %692, %v570
  %v694 = vpop.permute.xlu0 %693
  %695 = vset.pattern.permute.xlu0 0
  %696 = vperm.xlu0 %695, %v571
  %v697 = vpop.permute.xlu0 %696
  %698 = vset.pattern.permute.xlu0 0
  %699 = vperm.xlu0 %698, %v572
  %v700 = vpop.permute.xlu0 %699
  %v701 = vlaneseq
  %v702 = vand.u32 %v701, 127
  %v703 = vperm.slane %v607, %v702
  %v704 = vperm.slane %v610, %v702
  %v705 = vperm.slane %v613, %v702
  %v706 = vperm.slane %v616, %v702
  %v707 = vperm.slane %v619, %v702
  %v708 = vperm.slane %v622, %v702
  %v709 = vperm.slane %v625, %v702
  %v710 = vperm.slane %v628, %v702
  %v711 = vperm.slane %v631, %v702
  %v712 = vperm.slane %v634, %v702
  %v713 = vperm.slane %v637, %v702
  %v714 = vperm.slane %v640, %v702
  %v715 = vperm.slane %v643, %v702
  %v716 = vperm.slane %v646, %v702
  %v717 = vperm.slane %v649, %v702
  %v718 = vperm.slane %v652, %v702
  %v719 = vperm.slane %v655, %v702
  %v720 = vperm.slane %v658, %v702
  %v721 = vperm.slane %v661, %v702
  %v722 = vperm.slane %v664, %v702
  %v723 = vperm.slane %v667, %v702
  %v724 = vperm.slane %v670, %v702
  %v725 = vperm.slane %v673, %v702
  %v726 = vperm.slane %v676, %v702
  %v727 = vperm.slane %v679, %v702
  %v728 = vperm.slane %v682, %v702
  %v729 = vperm.slane %v685, %v702
  %v730 = vperm.slane %v688, %v702
  %v731 = vperm.slane %v691, %v702
  %v732 = vperm.slane %v694, %v702
  %v733 = vperm.slane %v697, %v702
  %v734 = vperm.slane %v700, %v702
  %vm735 = vcmask 1041409
  %v736 = vsel %vm735, %v704, %v703
  %vm737 = vcmask 1042434
  %v738 = vsel %vm737, %v705, %v736
  %vm739 = vcmask 1043459
  %v740 = vsel %vm739, %v706, %v738
  %vm741 = vcmask 1044484
  %v742 = vsel %vm741, %v707, %v740
  %vm743 = vcmask 1045509
  %v744 = vsel %vm743, %v708, %v742
  %vm745 = vcmask 1046534
  %v746 = vsel %vm745, %v709, %v744
  %vm747 = vcmask 1047559
  %v748 = vsel %vm747, %v710, %v746
  %v749 = vsel %vm735, %v712, %v711
  %v750 = vsel %vm737, %v713, %v749
  %v751 = vsel %vm739, %v714, %v750
  %v752 = vsel %vm741, %v715, %v751
  %v753 = vsel %vm743, %v716, %v752
  %v754 = vsel %vm745, %v717, %v753
  %v755 = vsel %vm747, %v718, %v754
  %v756 = vsel %vm735, %v720, %v719
  %v757 = vsel %vm737, %v721, %v756
  %v758 = vsel %vm739, %v722, %v757
  %v759 = vsel %vm741, %v723, %v758
  %v760 = vsel %vm743, %v724, %v759
  %v761 = vsel %vm745, %v725, %v760
  %v762 = vsel %vm747, %v726, %v761
  %v763 = vsel %vm735, %v728, %v727
  %v764 = vsel %vm737, %v729, %v763
  %v765 = vsel %vm739, %v730, %v764
  %v766 = vsel %vm741, %v731, %v765
  %v767 = vsel %vm743, %v732, %v766
  %v768 = vsel %vm745, %v733, %v767
  %v769 = vsel %vm747, %v734, %v768
  %vm774 = vcmask 15360
  %775 = vst.msk [vmem:[%s4] sm:$0xff] %vm774, %v748
  %776 = vst.msk [vmem:[%s4 + $0x8] sm:$0xff] %vm774, %v755
  %777 = vst.msk [vmem:[%s4 + $0x10] sm:$0xff] %vm774, %v762
  %778 = vst.msk [vmem:[%s4 + $0x18] sm:$0xff] %vm774, %v769
  // Predicated region
  $region18: #{tpu_custom_call.1} parent=0 // pred_check
    _
  $region19: #{tpu_custom_call.1} parent=0 // pred_check_branch
    %780 = sbr.rel (0) target = $region21
  $region20: #{tpu_custom_call.1} parent=0 // pred_region
    _
  $region21: #{tpu_custom_call.1} parent=0 // pred_fallthru
    _
  // Predicated region
  $region22: #{tpu_custom_call.1} parent=0 // pred_check
    _
  $region23: #{tpu_custom_call.1} parent=0 // pred_check_branch
    %782 = sbr.rel (0) target = $region25
  $region24: #{tpu_custom_call.1} parent=0 // pred_region
    _
  $region25: #{tpu_custom_call.1} parent=0 // pred_fallthru
    _

</llo_original>
